<compile_context>
chip_gen: v7x
topology: tpu7x:2x2x1
jax: 0.10.0
libtpu: 0.0.40
codegen_flags: <defaults>
</compile_context>

<pallas_src>
import functools

import jax
import jax.numpy as jnp
from jax.experimental import pallas as pl
from jax.experimental.pallas import tpu as pltpu

BN_EPS = 1e-5


def _round_up(n, m):
    return ((n + m - 1) // m) * m


def _connect4_kernel(x_ref, w1_ref, w2_ref, g1_ref, be1_ref, g2_ref, be2_ref,
                     wh_ref, bh_ref, out_ref, st1_ref, st2_ref,
                     *, tile, n_true, n_pad):
    p = pl.program_id(0)          # phase: 0 = bn1 stats, 1 = bn2 stats, 2 = emit
    t = pl.program_id(1)          # batch tile
    inv_n = 1.0 / n_true

    @pl.when(jnp.logical_and(p == 0, t == 0))
    def _init():
        st1_ref[...] = jnp.zeros_like(st1_ref)
        st2_ref[...] = jnp.zeros_like(st2_ref)

    # conv1 (7x7 valid on a 7x7 board) == dense matmul (K zero-padded 98 -> 128).
    # The conv bias is omitted: training-mode BN subtracts the batch mean, so a
    # per-channel bias cancels exactly.  With zero-padded batch rows and no bias,
    # padded rows give h1 == 0 and contribute nothing to the layer-1 statistics.
    h1 = jnp.dot(x_ref[...], w1_ref[...], preferred_element_type=jnp.float32)

    @pl.when(p == 0)
    def _phase0():
        st1_ref[0:1, :] += jnp.sum(h1, axis=0, keepdims=True)
        st1_ref[1:2, :] += jnp.sum(h1 * h1, axis=0, keepdims=True)
        out_ref[...] = jnp.zeros_like(out_ref)

    @pl.when(jnp.logical_and(p == 1, t == 0))
    def _finalize_bn1():
        mu = st1_ref[0:1, :] * inv_n
        var = jnp.maximum(st1_ref[1:2, :] * inv_n - mu * mu, 0.0)
        s = g1_ref[...] * jax.lax.rsqrt(var + BN_EPS)
        st1_ref[2:3, :] = s                       # folded BN scale
        st1_ref[3:4, :] = be1_ref[...] - mu * s   # folded BN shift

    @pl.when(p >= 1)
    def _phases_1_2():
        h1n = jnp.maximum(h1 * st1_ref[2:3, :] + st1_ref[3:4, :], 0.0)
        # conv2 (1x1 on 1x1 spatial) == dense 128 -> 32 (bias cancelled by bn2)
        h2 = jnp.dot(h1n, w2_ref[...], preferred_element_type=jnp.float32)

        @pl.when(p == 1)
        def _phase1():
            if n_pad != n_true:   # static: mask padded rows out of the stats
                rows = t * tile + jax.lax.broadcasted_iota(jnp.int32, (tile, 1), 0)
                h2m = h2 * (rows < n_true).astype(jnp.float32)
            else:
                h2m = h2
            st2_ref[0:1, :] += jnp.sum(h2m, axis=0, keepdims=True)
            st2_ref[1:2, :] += jnp.sum(h2m * h2m, axis=0, keepdims=True)
            out_ref[...] = jnp.zeros_like(out_ref)

        @pl.when(jnp.logical_and(p == 2, t == 0))
        def _finalize_bn2():
            mu = st2_ref[0:1, :] * inv_n
            var = jnp.maximum(st2_ref[1:2, :] * inv_n - mu * mu, 0.0)
            s = g2_ref[...] * jax.lax.rsqrt(var + BN_EPS)
            st2_ref[2:3, :] = s
            st2_ref[3:4, :] = be2_ref[...] - mu * s

        @pl.when(p == 2)
        def _phase2():
            h2n = jnp.maximum(h2 * st2_ref[2:3, :] + st2_ref[3:4, :], 0.0)
            # fused heads: lanes 0..6 = policy logits, lane 7 = value
            hh = jnp.dot(h2n, wh_ref[...],
                         preferred_element_type=jnp.float32) + bh_ref[...]
            lane = jax.lax.broadcasted_iota(jnp.int32, hh.shape, 1)
            is_pol = lane < 7
            m = jnp.max(jnp.where(is_pol, hh, -jnp.inf), axis=1, keepdims=True)
            e = jnp.where(is_pol, jnp.exp(hh - m), 0.0)
            denom = jnp.sum(e, axis=1, keepdims=True)
            out_ref[...] = jnp.where(is_pol, e / denom, hh)


def init_params(key):
    """Deterministic synthetic parameters with the PyTorch shapes."""
    ks = jax.random.split(key, 8)
    p = {}
    p["conv1_w"] = 0.1 * jax.random.normal(ks[0], (128, 2, 7, 7), jnp.float32)
    p["conv1_b"] = 0.1 * jax.random.normal(ks[1], (128,), jnp.float32)
    p["bn1_g"] = jnp.ones((128,), jnp.float32)
    p["bn1_b"] = jnp.zeros((128,), jnp.float32)
    p["conv2_w"] = 0.1 * jax.random.normal(ks[2], (32, 128, 1, 1), jnp.float32)
    p["conv2_b"] = 0.1 * jax.random.normal(ks[3], (32,), jnp.float32)
    p["bn2_g"] = jnp.ones((32,), jnp.float32)
    p["bn2_b"] = jnp.zeros((32,), jnp.float32)
    p["pol_w"] = 0.1 * jax.random.normal(ks[4], (7, 32), jnp.float32)
    p["pol_b"] = 0.1 * jax.random.normal(ks[5], (7,), jnp.float32)
    p["val_w"] = 0.1 * jax.random.normal(ks[6], (1, 32), jnp.float32)
    p["val_b"] = 0.1 * jax.random.normal(ks[7], (1,), jnp.float32)
    return p


def connect4_forward(x, p):
    """x: (N, 2, 7, 7) float32 NCHW.  Returns (policy, value) like the module."""
    N = x.shape[0]
    assert x.shape[1:] == (2, 7, 7), "Connect4NetworkV2 expects (N, 2, 7, 7)"
    f32 = jnp.float32

    tile = min(1024, _round_up(max(N, 1), 8))
    n_pad = _round_up(N, tile)
    n_tiles = n_pad // tile

    # Flatten input / conv1 weight consistently over (C_in, kH, kW); zero-pad
    # the contraction dim 98 -> 128 so tiles are MXU/lane aligned.
    x_flat = x.reshape(N, 98).astype(f32)
    x_pad = jnp.zeros((n_pad, 128), f32).at[:N, :98].set(x_flat)
    w1 = jnp.zeros((128, 128), f32).at[:98, :].set(
        p["conv1_w"].reshape(128, 98).T.astype(f32))
    w2 = p["conv2_w"].reshape(32, 128).T.astype(f32)                 # (128, 32)
    g1 = p["bn1_g"].reshape(1, 128).astype(f32)
    be1 = p["bn1_b"].reshape(1, 128).astype(f32)
    g2 = p["bn2_g"].reshape(1, 32).astype(f32)
    be2 = p["bn2_b"].reshape(1, 32).astype(f32)
    # Fused heads: policy (32,7) | value (32,1) -> (32,8); same for biases.
    wh = jnp.concatenate([p["pol_w"].T, p["val_w"].T], axis=1).astype(f32)
    bh = jnp.concatenate([p["pol_b"], p["val_b"]]).reshape(1, 8).astype(f32)
    # NOTE: conv1_b / conv2_b are intentionally NOT passed in: training-mode
    # BatchNorm subtracts the batch mean, so per-channel conv biases cancel.

    kernel = functools.partial(_connect4_kernel, tile=tile, n_true=N, n_pad=n_pad)

    const = lambda ph, ti: (0, 0)
    row = lambda ph, ti: (ti, 0)

    flops = n_pad * (3 * 2 * 128 * 128 + 2 * 2 * 128 * 32 + 2 * 32 * 8)
    bytes_accessed = (3 * n_pad * 128 + 3 * n_pad * 8
                      + 128 * 128 + 128 * 32 + 32 * 8 + 2 * 128 + 2 * 32 + 8) * 4

    out = pl.pallas_call(
        kernel,
        out_shape=jax.ShapeDtypeStruct((n_pad, 8), f32),
        grid_spec=pltpu.PrefetchScalarGridSpec(
            num_scalar_prefetch=0,
            grid=(3, n_tiles),
            in_specs=[
                pl.BlockSpec((tile, 128), row),    # x (padded)
                pl.BlockSpec((128, 128), const),   # conv1 weight (padded K)
                pl.BlockSpec((128, 32), const),    # conv2 weight
                pl.BlockSpec((1, 128), const),     # bn1 gamma
                pl.BlockSpec((1, 128), const),     # bn1 beta
                pl.BlockSpec((1, 32), const),      # bn2 gamma
                pl.BlockSpec((1, 32), const),      # bn2 beta
                pl.BlockSpec((32, 8), const),      # fused head weight
                pl.BlockSpec((1, 8), const),       # fused head bias
            ],
            out_specs=pl.BlockSpec((tile, 8), row),
            scratch_shapes=[
                pltpu.VMEM((4, 128), f32),         # bn1: sum | sumsq | scale | shift
                pltpu.VMEM((4, 32), f32),          # bn2: sum | sumsq | scale | shift
            ],
        ),
        compiler_params=pltpu.CompilerParams(
            # Phase ordering + cross-tile stat accumulation are order dependent,
            # so both grid axes must stay "arbitrary" for exact whole-batch BN.
            # TODO(synk): a cross-core (CMEM/semaphore) stat reduction would let
            # the batch axis go "parallel" on v7x's two TensorCores.
            dimension_semantics=("arbitrary", "arbitrary"),
            vmem_limit_bytes=32 * 1024 * 1024,
        ),
        cost_estimate=pl.CostEstimate(
            flops=int(flops),
            transcendentals=int(n_pad * 7),
            bytes_accessed=int(bytes_accessed)),
    )(x_pad, w1, w2, g1, be1, g2, be2, wh, bh)

    policy = out[:N, :7]
    value = out[:N, 7:8]
    if N == 1:
        policy = policy.reshape(7)   # mirror torch `.squeeze()` on the policy
    return policy, value


if __name__ == "__main__":
    key = jax.random.PRNGKey(0)
    kx, kp = jax.random.split(key)

    # Connect4 input: batch=2, 2 planes, 7x7 board (7x7 valid conv -> 1x1).
    x = jax.random.normal(kx, (2, 2, 7, 7), dtype=jnp.float32)
    params = init_params(kp)

    policy, value = connect4_forward(x, params)
    jax.block_until_ready((policy, value))

    assert policy.shape == (2, 7) and value.shape == (2, 1)
    assert bool(jnp.all(jnp.isfinite(policy))) and bool(jnp.all(jnp.isfinite(value)))
    assert bool(jnp.allclose(jnp.sum(policy, axis=1), 1.0, atol=1e-5))
    print("KERNEL_OK")
</pallas_src>

<mosaic_0001>
module attributes {stable_mosaic.version = 11 : i64} {
  func.func @_connect4_kernel(%arg0: i32, %arg1: i32, %arg2: memref<8x128xf32, #tpu.memory_space<vmem>>, %arg3: memref<128x128xf32, #tpu.memory_space<vmem>>, %arg4: memref<128x32xf32, #tpu.memory_space<vmem>>, %arg5: memref<1x128xf32, #tpu.memory_space<vmem>>, %arg6: memref<1x128xf32, #tpu.memory_space<vmem>>, %arg7: memref<1x32xf32, #tpu.memory_space<vmem>>, %arg8: memref<1x32xf32, #tpu.memory_space<vmem>>, %arg9: memref<32x8xf32, #tpu.memory_space<vmem>>, %arg10: memref<1x8xf32, #tpu.memory_space<vmem>>, %arg11: memref<8x8xf32, #tpu.memory_space<vmem>>, %arg12: memref<4x128xf32, #tpu.memory_space<vmem>>, %arg13: memref<4x32xf32, #tpu.memory_space<vmem>>) attributes {dimension_semantics = [#tpu.dimension_semantics<arbitrary>, #tpu.dimension_semantics<arbitrary>], iteration_bounds = array<i64: 3, 1>, scalar_prefetch = 0 : i64, scratch_operands = 2 : i64, tpu.core_type = #tpu.core_type<tc>, window_params = [{transform_indices = @transform_0, window_bounds = array<i64: 8, 128>}, {pipeline_mode = #tpu.pipeline_mode<synchronous>, transform_indices = @transform_1, window_bounds = array<i64: 128, 128>}, {pipeline_mode = #tpu.pipeline_mode<synchronous>, transform_indices = @transform_2, window_bounds = array<i64: 128, 32>}, {pipeline_mode = #tpu.pipeline_mode<synchronous>, transform_indices = @transform_3, window_bounds = array<i64: 1, 128>}, {pipeline_mode = #tpu.pipeline_mode<synchronous>, transform_indices = @transform_4, window_bounds = array<i64: 1, 128>}, {pipeline_mode = #tpu.pipeline_mode<synchronous>, transform_indices = @transform_5, window_bounds = array<i64: 1, 32>}, {pipeline_mode = #tpu.pipeline_mode<synchronous>, transform_indices = @transform_6, window_bounds = array<i64: 1, 32>}, {pipeline_mode = #tpu.pipeline_mode<synchronous>, transform_indices = @transform_7, window_bounds = array<i64: 32, 8>}, {pipeline_mode = #tpu.pipeline_mode<synchronous>, transform_indices = @transform_8, window_bounds = array<i64: 1, 8>}, {transform_indices = @transform_9, window_bounds = array<i64: 8, 8>}]} {
    %c0_i32 = arith.constant 0 : i32
    %0 = arith.cmpi eq, %arg0, %c0_i32 : i32
    %c0_i32_0 = arith.constant 0 : i32
    %1 = arith.cmpi eq, %arg1, %c0_i32_0 : i32
    %2 = arith.andi %0, %1 : i1
    %3 = arith.extui %2 : i1 to i32
    %c0_i32_1 = arith.constant 0 : i32
    %4 = arith.cmpi ne, %3, %c0_i32_1 : i32
    scf.if %4 {
      %cst_11 = arith.constant 0.000000e+00 : f32
      %19 = vector.broadcast %cst_11 : f32 to vector<4x128xf32>
      %c0_12 = arith.constant 0 : index
      %c0_13 = arith.constant 0 : index
      %20 = vector.load %arg12[%c0_12, %c0_13] : memref<4x128xf32, #tpu.memory_space<vmem>>, vector<4x128xf32>
      tpu.vector_store %arg12[%c0_12, %c0_13], %19 {strides = array<i32>} : memref<4x128xf32, #tpu.memory_space<vmem>>, vector<4x128xf32>,
      %cst_14 = arith.constant 0.000000e+00 : f32
      %21 = vector.broadcast %cst_14 : f32 to vector<4x32xf32>
      %c0_15 = arith.constant 0 : index
      %c0_16 = arith.constant 0 : index
      %22 = vector.load %arg13[%c0_15, %c0_16] : memref<4x32xf32, #tpu.memory_space<vmem>>, vector<4x32xf32>
      tpu.vector_store %arg13[%c0_15, %c0_16], %21 {strides = array<i32>} : memref<4x32xf32, #tpu.memory_space<vmem>>, vector<4x32xf32>,
    } else {
    }
    %c0 = arith.constant 0 : index
    %c0_2 = arith.constant 0 : index
    %5 = vector.load %arg2[%c0, %c0_2] : memref<8x128xf32, #tpu.memory_space<vmem>>, vector<8x128xf32>
    %c0_3 = arith.constant 0 : index
    %c0_4 = arith.constant 0 : index
    %6 = vector.load %arg3[%c0_3, %c0_4] : memref<128x128xf32, #tpu.memory_space<vmem>>, vector<128x128xf32>
    %cst = arith.constant dense<0.000000e+00> : vector<8x128xf32>
    %7 = tpu.matmul %5, %6, %cst {dimension_numbers = #tpu.dot_dimension_numbers<[1], [0], [0], [1], [0, 0, 1, 1], [], []>} : vector<8x128xf32>, vector<128x128xf32>, vector<8x128xf32> -> vector<8x128xf32>
    %c0_i32_5 = arith.constant 0 : i32
    %8 = arith.cmpi eq, %arg0, %c0_i32_5 : i32
    %9 = arith.extui %8 : i1 to i32
    %c0_i32_6 = arith.constant 0 : i32
    %10 = arith.cmpi ne, %9, %c0_i32_6 : i32
    scf.if %10 {
      %c0_11 = arith.constant 0 : index
      %c0_12 = arith.constant 0 : index
      %19 = vector.load %arg12[%c0_11, %c0_12] : memref<4x128xf32, #tpu.memory_space<vmem>>, vector<1x128xf32>
      %cst_13 = arith.constant dense<0.000000e+00> : vector<128xf32>
      %20 = vector.multi_reduction <add>, %7, %cst_13 [0] : vector<8x128xf32> to vector<128xf32>
      %21 = vector.shape_cast %20 : vector<128xf32> to vector<1x128xf32>
      %22 = arith.addf %19, %21 : vector<1x128xf32>
      %c0_14 = arith.constant 0 : index
      %c0_15 = arith.constant 0 : index
      %23 = vector.load %arg12[%c0_14, %c0_15] : memref<4x128xf32, #tpu.memory_space<vmem>>, vector<1x128xf32>
      tpu.vector_store %arg12[%c0_14, %c0_15], %22 {strides = array<i32>} : memref<4x128xf32, #tpu.memory_space<vmem>>, vector<1x128xf32>,
      %c1 = arith.constant 1 : index
      %c0_16 = arith.constant 0 : index
      %24 = vector.load %arg12[%c1, %c0_16] : memref<4x128xf32, #tpu.memory_space<vmem>>, vector<1x128xf32>
      %25 = arith.mulf %7, %7 : vector<8x128xf32>
      %cst_17 = arith.constant dense<0.000000e+00> : vector<128xf32>
      %26 = vector.multi_reduction <add>, %25, %cst_17 [0] : vector<8x128xf32> to vector<128xf32>
      %27 = vector.shape_cast %26 : vector<128xf32> to vector<1x128xf32>
      %28 = arith.addf %24, %27 : vector<1x128xf32>
      %c1_18 = arith.constant 1 : index
      %c0_19 = arith.constant 0 : index
      %29 = vector.load %arg12[%c1_18, %c0_19] : memref<4x128xf32, #tpu.memory_space<vmem>>, vector<1x128xf32>
      tpu.vector_store %arg12[%c1_18, %c0_19], %28 {strides = array<i32>} : memref<4x128xf32, #tpu.memory_space<vmem>>, vector<1x128xf32>,
      %cst_20 = arith.constant 0.000000e+00 : f32
      %30 = vector.broadcast %cst_20 : f32 to vector<8x8xf32>
      %c0_21 = arith.constant 0 : index
      %c0_22 = arith.constant 0 : index
      %31 = vector.load %arg11[%c0_21, %c0_22] : memref<8x8xf32, #tpu.memory_space<vmem>>, vector<8x8xf32>
      tpu.vector_store %arg11[%c0_21, %c0_22], %30 {strides = array<i32>} : memref<8x8xf32, #tpu.memory_space<vmem>>, vector<8x8xf32>,
    } else {
    }
    %c1_i32 = arith.constant 1 : i32
    %11 = arith.cmpi eq, %arg0, %c1_i32 : i32
    %c0_i32_7 = arith.constant 0 : i32
    %12 = arith.cmpi eq, %arg1, %c0_i32_7 : i32
    %13 = arith.andi %11, %12 : i1
    %14 = arith.extui %13 : i1 to i32
    %c0_i32_8 = arith.constant 0 : i32
    %15 = arith.cmpi ne, %14, %c0_i32_8 : i32
    scf.if %15 {
      %c0_11 = arith.constant 0 : index
      %c0_12 = arith.constant 0 : index
      %19 = vector.load %arg12[%c0_11, %c0_12] : memref<4x128xf32, #tpu.memory_space<vmem>>, vector<1x128xf32>
      %cst_13 = arith.constant 5.000000e-01 : f32
      %20 = vector.broadcast %cst_13 : f32 to vector<1x128xf32>
      %21 = arith.mulf %19, %20 : vector<1x128xf32>
      %c1 = arith.constant 1 : index
      %c0_14 = arith.constant 0 : index
      %22 = vector.load %arg12[%c1, %c0_14] : memref<4x128xf32, #tpu.memory_space<vmem>>, vector<1x128xf32>
      %cst_15 = arith.constant 5.000000e-01 : f32
      %23 = vector.broadcast %cst_15 : f32 to vector<1x128xf32>
      %24 = arith.mulf %22, %23 : vector<1x128xf32>
      %25 = arith.mulf %21, %21 : vector<1x128xf32>
      %26 = arith.subf %24, %25 : vector<1x128xf32>
      %cst_16 = arith.constant 0.000000e+00 : f32
      %27 = vector.broadcast %cst_16 : f32 to vector<1x128xf32>
      %28 = arith.maximumf %26, %27 : vector<1x128xf32>
      %c0_17 = arith.constant 0 : index
      %c0_18 = arith.constant 0 : index
      %29 = vector.load %arg5[%c0_17, %c0_18] : memref<1x128xf32, #tpu.memory_space<vmem>>, vector<1x128xf32>
      %cst_19 = arith.constant 9.99999974E-6 : f32
      %30 = vector.broadcast %cst_19 : f32 to vector<1x128xf32>
      %31 = arith.addf %28, %30 : vector<1x128xf32>
      %32 = math.rsqrt %31 : vector<1x128xf32>
      %33 = arith.mulf %29, %32 : vector<1x128xf32>
      %c2 = arith.constant 2 : index
      %c0_20 = arith.constant 0 : index
      %34 = vector.load %arg12[%c2, %c0_20] : memref<4x128xf32, #tpu.memory_space<vmem>>, vector<1x128xf32>
      tpu.vector_store %arg12[%c2, %c0_20], %33 {strides = array<i32>} : memref<4x128xf32, #tpu.memory_space<vmem>>, vector<1x128xf32>,
      %c0_21 = arith.constant 0 : index
      %c0_22 = arith.constant 0 : index
      %35 = vector.load %arg6[%c0_21, %c0_22] : memref<1x128xf32, #tpu.memory_space<vmem>>, vector<1x128xf32>
      %36 = arith.mulf %21, %33 : vector<1x128xf32>
      %37 = arith.subf %35, %36 : vector<1x128xf32>
      %c3 = arith.constant 3 : index
      %c0_23 = arith.constant 0 : index
      %38 = vector.load %arg12[%c3, %c0_23] : memref<4x128xf32, #tpu.memory_space<vmem>>, vector<1x128xf32>
      tpu.vector_store %arg12[%c3, %c0_23], %37 {strides = array<i32>} : memref<4x128xf32, #tpu.memory_space<vmem>>, vector<1x128xf32>,
    } else {
    }
    %c1_i32_9 = arith.constant 1 : i32
    %16 = arith.cmpi sge, %arg0, %c1_i32_9 : i32
    %17 = arith.extui %16 : i1 to i32
    %c0_i32_10 = arith.constant 0 : i32
    %18 = arith.cmpi ne, %17, %c0_i32_10 : i32
    scf.if %18 {
      %c2 = arith.constant 2 : index
      %c0_11 = arith.constant 0 : index
      %19 = vector.load %arg12[%c2, %c0_11] : memref<4x128xf32, #tpu.memory_space<vmem>>, vector<1x128xf32>
      %20 = vector.broadcast %19 : vector<1x128xf32> to vector<8x128xf32>
      %21 = arith.mulf %7, %20 : vector<8x128xf32>
      %c3 = arith.constant 3 : index
      %c0_12 = arith.constant 0 : index
      %22 = vector.load %arg12[%c3, %c0_12] : memref<4x128xf32, #tpu.memory_space<vmem>>, vector<1x128xf32>
      %23 = vector.broadcast %22 : vector<1x128xf32> to vector<8x128xf32>
      %24 = arith.addf %21, %23 : vector<8x128xf32>
      %cst_13 = arith.constant 0.000000e+00 : f32
      %25 = vector.broadcast %cst_13 : f32 to vector<8x128xf32>
      %26 = arith.maximumf %24, %25 : vector<8x128xf32>
      %c0_14 = arith.constant 0 : index
      %c0_15 = arith.constant 0 : index
      %27 = vector.load %arg4[%c0_14, %c0_15] : memref<128x32xf32, #tpu.memory_space<vmem>>, vector<128x32xf32>
      %cst_16 = arith.constant dense<0.000000e+00> : vector<8x32xf32>
      %28 = tpu.matmul %26, %27, %cst_16 {dimension_numbers = #tpu.dot_dimension_numbers<[1], [0], [0], [1], [0, 0, 1, 1], [], []>} : vector<8x128xf32>, vector<128x32xf32>, vector<8x32xf32> -> vector<8x32xf32>
      %c1_i32_17 = arith.constant 1 : i32
      %29 = arith.cmpi eq, %arg0, %c1_i32_17 : i32
      %30 = arith.extui %29 : i1 to i32
      %c0_i32_18 = arith.constant 0 : i32
      %31 = arith.cmpi ne, %30, %c0_i32_18 : i32
      scf.if %31 {
        %c8_i32 = arith.constant 8 : i32
        %40 = arith.muli %arg1, %c8_i32 : i32
        %41 = tpu.iota {dimensions = array<i32: 0>} : vector<8x1xi32>
        %42 = vector.broadcast %40 : i32 to vector<8x1xi32>
        %43 = arith.addi %42, %41 : vector<8x1xi32>
        %c2_i32_23 = arith.constant 2 : i32
        %44 = vector.broadcast %c2_i32_23 : i32 to vector<8x1xi32>
        %45 = arith.cmpi slt, %43, %44 : vector<8x1xi32>
        %46 = arith.extui %45 : vector<8x1xi1> to vector<8x1xi32>
        %47 = arith.sitofp %46 : vector<8x1xi32> to vector<8x1xf32>
        %48 = vector.broadcast %47 : vector<8x1xf32> to vector<8x32xf32>
        %49 = arith.mulf %28, %48 : vector<8x32xf32>
        %c0_24 = arith.constant 0 : index
        %c0_25 = arith.constant 0 : index
        %50 = vector.load %arg13[%c0_24, %c0_25] : memref<4x32xf32, #tpu.memory_space<vmem>>, vector<1x32xf32>
        %cst_26 = arith.constant dense<0.000000e+00> : vector<32xf32>
        %51 = vector.multi_reduction <add>, %49, %cst_26 [0] : vector<8x32xf32> to vector<32xf32>
        %52 = vector.shape_cast %51 : vector<32xf32> to vector<1x32xf32>
        %53 = arith.addf %50, %52 : vector<1x32xf32>
        %c0_27 = arith.constant 0 : index
        %c0_28 = arith.constant 0 : index
        %54 = vector.load %arg13[%c0_27, %c0_28] : memref<4x32xf32, #tpu.memory_space<vmem>>, vector<1x32xf32>
        tpu.vector_store %arg13[%c0_27, %c0_28], %53 {strides = array<i32>} : memref<4x32xf32, #tpu.memory_space<vmem>>, vector<1x32xf32>,
        %c1 = arith.constant 1 : index
        %c0_29 = arith.constant 0 : index
        %55 = vector.load %arg13[%c1, %c0_29] : memref<4x32xf32, #tpu.memory_space<vmem>>, vector<1x32xf32>
        %56 = arith.mulf %49, %49 : vector<8x32xf32>
        %cst_30 = arith.constant dense<0.000000e+00> : vector<32xf32>
        %57 = vector.multi_reduction <add>, %56, %cst_30 [0] : vector<8x32xf32> to vector<32xf32>
        %58 = vector.shape_cast %57 : vector<32xf32> to vector<1x32xf32>
        %59 = arith.addf %55, %58 : vector<1x32xf32>
        %c1_31 = arith.constant 1 : index
        %c0_32 = arith.constant 0 : index
        %60 = vector.load %arg13[%c1_31, %c0_32] : memref<4x32xf32, #tpu.memory_space<vmem>>, vector<1x32xf32>
        tpu.vector_store %arg13[%c1_31, %c0_32], %59 {strides = array<i32>} : memref<4x32xf32, #tpu.memory_space<vmem>>, vector<1x32xf32>,
        %cst_33 = arith.constant 0.000000e+00 : f32
        %61 = vector.broadcast %cst_33 : f32 to vector<8x8xf32>
        %c0_34 = arith.constant 0 : index
        %c0_35 = arith.constant 0 : index
        %62 = vector.load %arg11[%c0_34, %c0_35] : memref<8x8xf32, #tpu.memory_space<vmem>>, vector<8x8xf32>
        tpu.vector_store %arg11[%c0_34, %c0_35], %61 {strides = array<i32>} : memref<8x8xf32, #tpu.memory_space<vmem>>, vector<8x8xf32>,
      } else {
      }
      %c2_i32 = arith.constant 2 : i32
      %32 = arith.cmpi eq, %arg0, %c2_i32 : i32
      %c0_i32_19 = arith.constant 0 : i32
      %33 = arith.cmpi eq, %arg1, %c0_i32_19 : i32
      %34 = arith.andi %32, %33 : i1
      %35 = arith.extui %34 : i1 to i32
      %c0_i32_20 = arith.constant 0 : i32
      %36 = arith.cmpi ne, %35, %c0_i32_20 : i32
      scf.if %36 {
        %c0_23 = arith.constant 0 : index
        %c0_24 = arith.constant 0 : index
        %40 = vector.load %arg13[%c0_23, %c0_24] : memref<4x32xf32, #tpu.memory_space<vmem>>, vector<1x32xf32>
        %cst_25 = arith.constant 5.000000e-01 : f32
        %41 = vector.broadcast %cst_25 : f32 to vector<1x32xf32>
        %42 = arith.mulf %40, %41 : vector<1x32xf32>
        %c1 = arith.constant 1 : index
        %c0_26 = arith.constant 0 : index
        %43 = vector.load %arg13[%c1, %c0_26] : memref<4x32xf32, #tpu.memory_space<vmem>>, vector<1x32xf32>
        %cst_27 = arith.constant 5.000000e-01 : f32
        %44 = vector.broadcast %cst_27 : f32 to vector<1x32xf32>
        %45 = arith.mulf %43, %44 : vector<1x32xf32>
        %46 = arith.mulf %42, %42 : vector<1x32xf32>
        %47 = arith.subf %45, %46 : vector<1x32xf32>
        %cst_28 = arith.constant 0.000000e+00 : f32
        %48 = vector.broadcast %cst_28 : f32 to vector<1x32xf32>
        %49 = arith.maximumf %47, %48 : vector<1x32xf32>
        %c0_29 = arith.constant 0 : index
        %c0_30 = arith.constant 0 : index
        %50 = vector.load %arg7[%c0_29, %c0_30] : memref<1x32xf32, #tpu.memory_space<vmem>>, vector<1x32xf32>
        %cst_31 = arith.constant 9.99999974E-6 : f32
        %51 = vector.broadcast %cst_31 : f32 to vector<1x32xf32>
        %52 = arith.addf %49, %51 : vector<1x32xf32>
        %53 = math.rsqrt %52 : vector<1x32xf32>
        %54 = arith.mulf %50, %53 : vector<1x32xf32>
        %c2_32 = arith.constant 2 : index
        %c0_33 = arith.constant 0 : index
        %55 = vector.load %arg13[%c2_32, %c0_33] : memref<4x32xf32, #tpu.memory_space<vmem>>, vector<1x32xf32>
        tpu.vector_store %arg13[%c2_32, %c0_33], %54 {strides = array<i32>} : memref<4x32xf32, #tpu.memory_space<vmem>>, vector<1x32xf32>,
        %c0_34 = arith.constant 0 : index
        %c0_35 = arith.constant 0 : index
        %56 = vector.load %arg8[%c0_34, %c0_35] : memref<1x32xf32, #tpu.memory_space<vmem>>, vector<1x32xf32>
        %57 = arith.mulf %42, %54 : vector<1x32xf32>
        %58 = arith.subf %56, %57 : vector<1x32xf32>
        %c3_36 = arith.constant 3 : index
        %c0_37 = arith.constant 0 : index
        %59 = vector.load %arg13[%c3_36, %c0_37] : memref<4x32xf32, #tpu.memory_space<vmem>>, vector<1x32xf32>
        tpu.vector_store %arg13[%c3_36, %c0_37], %58 {strides = array<i32>} : memref<4x32xf32, #tpu.memory_space<vmem>>, vector<1x32xf32>,
      } else {
      }
      %c2_i32_21 = arith.constant 2 : i32
      %37 = arith.cmpi eq, %arg0, %c2_i32_21 : i32
      %38 = arith.extui %37 : i1 to i32
      %c0_i32_22 = arith.constant 0 : i32
      %39 = arith.cmpi ne, %38, %c0_i32_22 : i32
      scf.if %39 {
        %c2_23 = arith.constant 2 : index
        %c0_24 = arith.constant 0 : index
        %40 = vector.load %arg13[%c2_23, %c0_24] : memref<4x32xf32, #tpu.memory_space<vmem>>, vector<1x32xf32>
        %41 = vector.broadcast %40 : vector<1x32xf32> to vector<8x32xf32>
        %42 = arith.mulf %28, %41 : vector<8x32xf32>
        %c3_25 = arith.constant 3 : index
        %c0_26 = arith.constant 0 : index
        %43 = vector.load %arg13[%c3_25, %c0_26] : memref<4x32xf32, #tpu.memory_space<vmem>>, vector<1x32xf32>
        %44 = vector.broadcast %43 : vector<1x32xf32> to vector<8x32xf32>
        %45 = arith.addf %42, %44 : vector<8x32xf32>
        %cst_27 = arith.constant 0.000000e+00 : f32
        %46 = vector.broadcast %cst_27 : f32 to vector<8x32xf32>
        %47 = arith.maximumf %45, %46 : vector<8x32xf32>
        %c0_28 = arith.constant 0 : index
        %c0_29 = arith.constant 0 : index
        %48 = vector.load %arg9[%c0_28, %c0_29] : memref<32x8xf32, #tpu.memory_space<vmem>>, vector<32x8xf32>
        %cst_30 = arith.constant dense<0.000000e+00> : vector<8x8xf32>
        %49 = tpu.matmul %47, %48, %cst_30 {dimension_numbers = #tpu.dot_dimension_numbers<[1], [0], [0], [1], [0, 0, 1, 1], [], []>} : vector<8x32xf32>, vector<32x8xf32>, vector<8x8xf32> -> vector<8x8xf32>
        %c0_31 = arith.constant 0 : index
        %c0_32 = arith.constant 0 : index
        %50 = vector.load %arg10[%c0_31, %c0_32] : memref<1x8xf32, #tpu.memory_space<vmem>>, vector<1x8xf32>
        %51 = vector.broadcast %50 : vector<1x8xf32> to vector<8x8xf32>
        %52 = arith.addf %49, %51 : vector<8x8xf32>
        %53 = tpu.iota {dimensions = array<i32: 1>} : vector<8x8xi32>
        %c7_i32 = arith.constant 7 : i32
        %54 = vector.broadcast %c7_i32 : i32 to vector<8x8xi32>
        %55 = arith.cmpi slt, %53, %54 : vector<8x8xi32>
        %cst_33 = arith.constant 0xFF800000 : f32
        %56 = vector.broadcast %cst_33 : f32 to vector<8x8xf32>
        %57 = arith.select %55, %52, %56 : vector<8x8xi1>, vector<8x8xf32>
        %cst_34 = arith.constant dense<0xFF800000> : vector<8xf32>
        %58 = vector.multi_reduction <maximumf>, %57, %cst_34 [1] : vector<8x8xf32> to vector<8xf32>
        %59 = vector.shape_cast %58 : vector<8xf32> to vector<8x1xf32>
        %60 = vector.broadcast %59 : vector<8x1xf32> to vector<8x8xf32>
        %61 = arith.subf %52, %60 : vector<8x8xf32>
        %62 = math.exp %61 : vector<8x8xf32>
        %cst_35 = arith.constant 0.000000e+00 : f32
        %63 = vector.broadcast %cst_35 : f32 to vector<8x8xf32>
        %64 = arith.select %55, %62, %63 : vector<8x8xi1>, vector<8x8xf32>
        %cst_36 = arith.constant dense<0.000000e+00> : vector<8xf32>
        %65 = vector.multi_reduction <add>, %64, %cst_36 [1] : vector<8x8xf32> to vector<8xf32>
        %66 = vector.shape_cast %65 : vector<8xf32> to vector<8x1xf32>
        %67 = vector.broadcast %66 : vector<8x1xf32> to vector<8x8xf32>
        %68 = arith.divf %64, %67 : vector<8x8xf32>
        %69 = arith.select %55, %68, %52 : vector<8x8xi1>, vector<8x8xf32>
        %c0_37 = arith.constant 0 : index
        %c0_38 = arith.constant 0 : index
        %70 = vector.load %arg11[%c0_37, %c0_38] : memref<8x8xf32, #tpu.memory_space<vmem>>, vector<8x8xf32>
        tpu.vector_store %arg11[%c0_37, %c0_38], %69 {strides = array<i32>} : memref<8x8xf32, #tpu.memory_space<vmem>>, vector<8x8xf32>,
      } else {
      }
    } else {
    }
    return
  }
  func.func @transform_0(%arg0: i32, %arg1: i32) -> (i32, i32) {
    %c0_i32 = arith.constant 0 : i32
    %c0_i32_0 = arith.constant 0 : i32
    return %arg1, %c0_i32 : i32, i32
  }
  func.func @transform_1(%arg0: i32, %arg1: i32) -> (i32, i32) {
    %c0_i32 = arith.constant 0 : i32
    %c0_i32_0 = arith.constant 0 : i32
    %c0_i32_1 = arith.constant 0 : i32
    return %c0_i32, %c0_i32_0 : i32, i32
  }
  func.func @transform_2(%arg0: i32, %arg1: i32) -> (i32, i32) {
    %c0_i32 = arith.constant 0 : i32
    %c0_i32_0 = arith.constant 0 : i32
    %c0_i32_1 = arith.constant 0 : i32
    return %c0_i32, %c0_i32_0 : i32, i32
  }
  func.func @transform_3(%arg0: i32, %arg1: i32) -> (i32, i32) {
    %c0_i32 = arith.constant 0 : i32
    %c0_i32_0 = arith.constant 0 : i32
    %c0_i32_1 = arith.constant 0 : i32
    return %c0_i32, %c0_i32_0 : i32, i32
  }
  func.func @transform_4(%arg0: i32, %arg1: i32) -> (i32, i32) {
    %c0_i32 = arith.constant 0 : i32
    %c0_i32_0 = arith.constant 0 : i32
    %c0_i32_1 = arith.constant 0 : i32
    return %c0_i32, %c0_i32_0 : i32, i32
  }
  func.func @transform_5(%arg0: i32, %arg1: i32) -> (i32, i32) {
    %c0_i32 = arith.constant 0 : i32
    %c0_i32_0 = arith.constant 0 : i32
    %c0_i32_1 = arith.constant 0 : i32
    return %c0_i32, %c0_i32_0 : i32, i32
  }
  func.func @transform_6(%arg0: i32, %arg1: i32) -> (i32, i32) {
    %c0_i32 = arith.constant 0 : i32
    %c0_i32_0 = arith.constant 0 : i32
    %c0_i32_1 = arith.constant 0 : i32
    return %c0_i32, %c0_i32_0 : i32, i32
  }
  func.func @transform_7(%arg0: i32, %arg1: i32) -> (i32, i32) {
    %c0_i32 = arith.constant 0 : i32
    %c0_i32_0 = arith.constant 0 : i32
    %c0_i32_1 = arith.constant 0 : i32
    return %c0_i32, %c0_i32_0 : i32, i32
  }
  func.func @transform_8(%arg0: i32, %arg1: i32) -> (i32, i32) {
    %c0_i32 = arith.constant 0 : i32
    %c0_i32_0 = arith.constant 0 : i32
    %c0_i32_1 = arith.constant 0 : i32
    return %c0_i32, %c0_i32_0 : i32, i32
  }
  func.func @transform_9(%arg0: i32, %arg1: i32) -> (i32, i32) {
    %c0_i32 = arith.constant 0 : i32
    %c0_i32_0 = arith.constant 0 : i32
    return %arg1, %c0_i32 : i32, i32
  }
}

</mosaic_0001>

<llo_original>
// kernel: tpu_custom_call.1
$region0: #{tpu_custom_call.1}
  #allocation0 [shape = 'u32[]', space=smem, size = 0x4, offset = 0x4, fixed_abs, tag = 'smem constant byte address 0x4 - core index']
  #allocation1 [shape = 'u32[144,128]{1,0:T(1,128)}', space=vmem, size = 0x12000, scoped, tag = 'internal scratch']
  #allocation2 [shape = 'f32[4,128]{1,0:T(4,128)}', space=vmem, size = 0x800, scoped, tag = 'scratch operand']
  #allocation3 [shape = 'f32[4,32]{1,0:T(4,128)}', space=vmem, size = 0x800, scoped, tag = 'scratch operand']
  %s0 = inlined_call_operand.vmem [shape: f32[8,128], index: 0, kind: input, shape index: {}]
  %s1 = inlined_call_operand.vmem [shape: f32[128,128], index: 1, kind: input, shape index: {}]
  %s2 = inlined_call_operand.vmem [shape: f32[128,32], index: 2, kind: input, shape index: {}]
  %s3 = inlined_call_operand.vmem [shape: f32[1,128], index: 3, kind: input, shape index: {}]
  %s4 = inlined_call_operand.vmem [shape: f32[1,128], index: 4, kind: input, shape index: {}]
  %s5 = inlined_call_operand.vmem [shape: f32[1,32], index: 5, kind: input, shape index: {}]
  %s6 = inlined_call_operand.vmem [shape: f32[1,32], index: 6, kind: input, shape index: {}]
  %s7 = inlined_call_operand.vmem [shape: f32[32,8], index: 7, kind: input, shape index: {}]
  %s8 = inlined_call_operand.vmem [shape: f32[1,8], index: 8, kind: input, shape index: {}]
  %s9 = inlined_call_operand.hbm [shape: f32[8,8], index: 9, kind: output, shape index: {}]
  %s10 = sld [smem:[#allocation0]]
  $region97: #{tpu_custom_call.1} parent=0
    _
  %s12 = ssub.s32 1, %s10
  %s13 = scalar_select 0, %s12, %s10
  $region1: #{tpu_custom_call.1} parent=0
    #allocation4 [shape = 'u8[4096]{0}', space=vmem, size = 0x1000, scoped, tag = 'output window, operand 0, single buffered']
    #allocation5 [shape = 's32[2]{0}', space=sflag, size = 0x8, scoped, tag = 'scoped memory for tpu_custom_call.1']
    %14 = vsyncpa [#allocation5], 0
    loop: start=0, step=1, limit=5
    $region2: #{tpu_custom_call.1} parent=1 // loop_pre_header
      _
    $region3: #{tpu_custom_call.1} parent=1 // loop_header
      %s16 = sphi 0, %s20
      %p17 = scmp.ge.s32.totalorder %s16, 5
      %s23 = sphi 0, %s35
      %s24 = sphi 0, %s31
      %s25 = sphi 0, %s23
      %s26 = sphi 0, %s24
      %s27 = sphi 0, %s25
      %s28 = sphi 0, %s26
      %s38 = sphi 0, %s40
      %s41 = sphi 0, %s38
      %s42 = sphi 0, %s41
      %s58 = sphi 0, %s42
      %s62 = sphi 0, %s62
      %s64 = sphi 0, %s62
      %s65 = sphi 0, %s64
      %s79 = sphi 0, %s65
      %s83 = sphi 0, %s83
      %s85 = sphi 0, %s83
      %s86 = sphi 0, %s85
      %s100 = sphi 0, %s86
      %s104 = sphi 0, %s104
      %s106 = sphi 0, %s104
      %s107 = sphi 0, %s106
      %s121 = sphi 0, %s107
      %s125 = sphi 0, %s125
      %s127 = sphi 0, %s125
      %s128 = sphi 0, %s127
      %s142 = sphi 0, %s128
      %s146 = sphi 0, %s146
      %s148 = sphi 0, %s146
      %s149 = sphi 0, %s148
      %s163 = sphi 0, %s149
      %s167 = sphi 0, %s167
      %s169 = sphi 0, %s167
      %s170 = sphi 0, %s169
      %s184 = sphi 0, %s170
      %s188 = sphi 0, %s188
      %s190 = sphi 0, %s188
      %s191 = sphi 0, %s190
      %s205 = sphi 0, %s191
      %s209 = sphi 0, %s209
      %s211 = sphi 0, %s209
      %s212 = sphi 0, %s211
      %s226 = sphi 0, %s212
      %s232 = sphi 0, %s234
      %s235 = sphi 0, %s232
      %s236 = sphi 0, %s235
      %s252 = sphi 0, %s236
    $region4: #{tpu_custom_call.1} parent=1 // loop_header_branch
      %19 = sbr.rel (%p17) target = $region8
    $region5: #{tpu_custom_call.1} parent=1 // loop_body
      %s21 = ssub.s32 %s16, 1
      %s22 = ssub.s32 %s16, 2
      %s29 = sadd.s32 1, %s24
      %p30 = scmp.ge.s32.totalorder %s29, 1
      %s31 = scalar_select %p30, 0, %s29
      %s32 = sadd.s32 1, %s23
      %s33 = scalar_select %p30, %s32, %s23
      %p34 = scmp.ge.s32.totalorder %s33, 3
      %s35 = scalar_select %p34, 0, %s33
      %s36 = ssub.s32 %s24, %s31
      %p37 = scmp.eq.s32.totalorder %s36, 0
      %s39 = sadd.s32 %s38, 1
      %s40 = scalar_select %p37, %s38, %s39
      %p43 = pneg %p37
      %p44 = scmp.eq.s32.totalorder %s16, 2
      %p45 = por %p43, %p44
      %p46 = scmp.ne.s32.totalorder %s38, %s41
      %p47 = scmp.eq.s32.totalorder %s16, 0
      %p48 = por %p46, %p47
      %p49 = scmp.ne.s32.totalorder %s38, %s41
      %p50 = scmp.eq.s32.totalorder %s21, 2
      %p51 = por %p49, %p50
      %p52 = scmp.ne.s32.totalorder %s41, %s42
      %p53 = scmp.eq.s32.totalorder %s21, 0
      %p54 = por %p52, %p53
      %p55 = scmp.ne.s32.totalorder %s41, %s42
      %p56 = scmp.eq.s32.totalorder %s22, 2
      %p57 = por %p55, %p56
      %p59 = scmp.ne.s32.totalorder %s42, %s58
      %p60 = scmp.eq.s32.totalorder %s22, 0
      %p61 = por %p59, %p60
      %s63 = sadd.s32 %s62, 1
      %p66 = scmp.eq.s32.totalorder %s16, 2
      %p67 = scmp.ne.s32.totalorder %s62, %s64
      %p68 = scmp.eq.s32.totalorder %s16, 0
      %p69 = por %p67, %p68
      %p70 = scmp.ne.s32.totalorder %s62, %s64
      %p71 = scmp.eq.s32.totalorder %s21, 2
      %p72 = por %p70, %p71
      %p73 = scmp.ne.s32.totalorder %s64, %s65
      %p74 = scmp.eq.s32.totalorder %s21, 0
      %p75 = por %p73, %p74
      %p76 = scmp.ne.s32.totalorder %s64, %s65
      %p77 = scmp.eq.s32.totalorder %s22, 2
      %p78 = por %p76, %p77
      %p80 = scmp.ne.s32.totalorder %s65, %s79
      %p81 = scmp.eq.s32.totalorder %s22, 0
      %p82 = por %p80, %p81
      %s84 = sadd.s32 %s83, 1
      %p87 = scmp.eq.s32.totalorder %s16, 2
      %p88 = scmp.ne.s32.totalorder %s83, %s85
      %p89 = scmp.eq.s32.totalorder %s16, 0
      %p90 = por %p88, %p89
      %p91 = scmp.ne.s32.totalorder %s83, %s85
      %p92 = scmp.eq.s32.totalorder %s21, 2
      %p93 = por %p91, %p92
      %p94 = scmp.ne.s32.totalorder %s85, %s86
      %p95 = scmp.eq.s32.totalorder %s21, 0
      %p96 = por %p94, %p95
      %p97 = scmp.ne.s32.totalorder %s85, %s86
      %p98 = scmp.eq.s32.totalorder %s22, 2
      %p99 = por %p97, %p98
      %p101 = scmp.ne.s32.totalorder %s86, %s100
      %p102 = scmp.eq.s32.totalorder %s22, 0
      %p103 = por %p101, %p102
      %s105 = sadd.s32 %s104, 1
      %p108 = scmp.eq.s32.totalorder %s16, 2
      %p109 = scmp.ne.s32.totalorder %s104, %s106
      %p110 = scmp.eq.s32.totalorder %s16, 0
      %p111 = por %p109, %p110
      %p112 = scmp.ne.s32.totalorder %s104, %s106
      %p113 = scmp.eq.s32.totalorder %s21, 2
      %p114 = por %p112, %p113
      %p115 = scmp.ne.s32.totalorder %s106, %s107
      %p116 = scmp.eq.s32.totalorder %s21, 0
      %p117 = por %p115, %p116
      %p118 = scmp.ne.s32.totalorder %s106, %s107
      %p119 = scmp.eq.s32.totalorder %s22, 2
      %p120 = por %p118, %p119
      %p122 = scmp.ne.s32.totalorder %s107, %s121
      %p123 = scmp.eq.s32.totalorder %s22, 0
      %p124 = por %p122, %p123
      %s126 = sadd.s32 %s125, 1
      %p129 = scmp.eq.s32.totalorder %s16, 2
      %p130 = scmp.ne.s32.totalorder %s125, %s127
      %p131 = scmp.eq.s32.totalorder %s16, 0
      %p132 = por %p130, %p131
      %p133 = scmp.ne.s32.totalorder %s125, %s127
      %p134 = scmp.eq.s32.totalorder %s21, 2
      %p135 = por %p133, %p134
      %p136 = scmp.ne.s32.totalorder %s127, %s128
      %p137 = scmp.eq.s32.totalorder %s21, 0
      %p138 = por %p136, %p137
      %p139 = scmp.ne.s32.totalorder %s127, %s128
      %p140 = scmp.eq.s32.totalorder %s22, 2
      %p141 = por %p139, %p140
      %p143 = scmp.ne.s32.totalorder %s128, %s142
      %p144 = scmp.eq.s32.totalorder %s22, 0
      %p145 = por %p143, %p144
      %s147 = sadd.s32 %s146, 1
      %p150 = scmp.eq.s32.totalorder %s16, 2
      %p151 = scmp.ne.s32.totalorder %s146, %s148
      %p152 = scmp.eq.s32.totalorder %s16, 0
      %p153 = por %p151, %p152
      %p154 = scmp.ne.s32.totalorder %s146, %s148
      %p155 = scmp.eq.s32.totalorder %s21, 2
      %p156 = por %p154, %p155
      %p157 = scmp.ne.s32.totalorder %s148, %s149
      %p158 = scmp.eq.s32.totalorder %s21, 0
      %p159 = por %p157, %p158
      %p160 = scmp.ne.s32.totalorder %s148, %s149
      %p161 = scmp.eq.s32.totalorder %s22, 2
      %p162 = por %p160, %p161
      %p164 = scmp.ne.s32.totalorder %s149, %s163
      %p165 = scmp.eq.s32.totalorder %s22, 0
      %p166 = por %p164, %p165
      %s168 = sadd.s32 %s167, 1
      %p171 = scmp.eq.s32.totalorder %s16, 2
      %p172 = scmp.ne.s32.totalorder %s167, %s169
      %p173 = scmp.eq.s32.totalorder %s16, 0
      %p174 = por %p172, %p173
      %p175 = scmp.ne.s32.totalorder %s167, %s169
      %p176 = scmp.eq.s32.totalorder %s21, 2
      %p177 = por %p175, %p176
      %p178 = scmp.ne.s32.totalorder %s169, %s170
      %p179 = scmp.eq.s32.totalorder %s21, 0
      %p180 = por %p178, %p179
      %p181 = scmp.ne.s32.totalorder %s169, %s170
      %p182 = scmp.eq.s32.totalorder %s22, 2
      %p183 = por %p181, %p182
      %p185 = scmp.ne.s32.totalorder %s170, %s184
      %p186 = scmp.eq.s32.totalorder %s22, 0
      %p187 = por %p185, %p186
      %s189 = sadd.s32 %s188, 1
      %p192 = scmp.eq.s32.totalorder %s16, 2
      %p193 = scmp.ne.s32.totalorder %s188, %s190
      %p194 = scmp.eq.s32.totalorder %s16, 0
      %p195 = por %p193, %p194
      %p196 = scmp.ne.s32.totalorder %s188, %s190
      %p197 = scmp.eq.s32.totalorder %s21, 2
      %p198 = por %p196, %p197
      %p199 = scmp.ne.s32.totalorder %s190, %s191
      %p200 = scmp.eq.s32.totalorder %s21, 0
      %p201 = por %p199, %p200
      %p202 = scmp.ne.s32.totalorder %s190, %s191
      %p203 = scmp.eq.s32.totalorder %s22, 2
      %p204 = por %p202, %p203
      %p206 = scmp.ne.s32.totalorder %s191, %s205
      %p207 = scmp.eq.s32.totalorder %s22, 0
      %p208 = por %p206, %p207
      %s210 = sadd.s32 %s209, 1
      %p213 = scmp.eq.s32.totalorder %s16, 2
      %p214 = scmp.ne.s32.totalorder %s209, %s211
      %p215 = scmp.eq.s32.totalorder %s16, 0
      %p216 = por %p214, %p215
      %p217 = scmp.ne.s32.totalorder %s209, %s211
      %p218 = scmp.eq.s32.totalorder %s21, 2
      %p219 = por %p217, %p218
      %p220 = scmp.ne.s32.totalorder %s211, %s212
      %p221 = scmp.eq.s32.totalorder %s21, 0
      %p222 = por %p220, %p221
      %p223 = scmp.ne.s32.totalorder %s211, %s212
      %p224 = scmp.eq.s32.totalorder %s22, 2
      %p225 = por %p223, %p224
      %p227 = scmp.ne.s32.totalorder %s212, %s226
      %p228 = scmp.eq.s32.totalorder %s22, 0
      %p229 = por %p227, %p228
      %s230 = ssub.s32 %s24, %s31
      %p231 = scmp.eq.s32.totalorder %s230, 0
      %s233 = sadd.s32 %s232, 1
      %s234 = scalar_select %p231, %s232, %s233
      %p237 = pneg %p231
      %p238 = scmp.eq.s32.totalorder %s16, 2
      %p239 = por %p237, %p238
      %p240 = scmp.ne.s32.totalorder %s232, %s235
      %p241 = scmp.eq.s32.totalorder %s16, 0
      %p242 = por %p240, %p241
      %p243 = scmp.ne.s32.totalorder %s232, %s235
      %p244 = scmp.eq.s32.totalorder %s21, 2
      %p245 = por %p243, %p244
      %p246 = scmp.ne.s32.totalorder %s235, %s236
      %p247 = scmp.eq.s32.totalorder %s21, 0
      %p248 = por %p246, %p247
      %p249 = scmp.ne.s32.totalorder %s235, %s236
      %p250 = scmp.eq.s32.totalorder %s22, 2
      %p251 = por %p249, %p250
      %p253 = scmp.ne.s32.totalorder %s236, %s252
      %p254 = scmp.eq.s32.totalorder %s22, 0
      %p255 = por %p253, %p254
      %p256 = scmp.le.s32.totalorder 1, %s16
      %p257 = scmp.lt.s32.totalorder %s16, 4
      %p258 = pnand %p256, %p257
      %p259 = pneg %p258
      // Predicated region
      $region9: #{tpu_custom_call.1} parent=5 // pred_check
        _
      $region10: #{tpu_custom_call.1} parent=5 // pred_check_branch
        %261 = sbr.rel (%p258) target = $region12
      $region11: #{tpu_custom_call.1} parent=5 // pred_region
        %s262 = ssub.s32 %s16, 1
        // Predicated region
        $region13: #{tpu_custom_call.1} parent=11 // pred_check
          %p263 = pneg %p54
        $region14: #{tpu_custom_call.1} parent=11 // pred_check_branch
          %265 = sbr.rel (%p263) target = $region16
        $region15: #{tpu_custom_call.1} parent=11 // pred_region
          %p266 = scmp.lt.s32.totalorder %s26, 0
          %s267 = scalar_select %p266, %s26, 0
          %s268 = smul.addr %s267, 8
          %s269 = scalar_lea.vmem %s0, %s268
        $region16: #{tpu_custom_call.1} parent=11 // pred_fallthru
          _
        // Predicated region
        $region17: #{tpu_custom_call.1} parent=11 // pred_check
          %p270 = pneg %p75
        $region18: #{tpu_custom_call.1} parent=11 // pred_check_branch
          %272 = sbr.rel (%p270) target = $region20
        $region19: #{tpu_custom_call.1} parent=11 // pred_region
          _
        $region20: #{tpu_custom_call.1} parent=11 // pred_fallthru
          _
        // Predicated region
        $region21: #{tpu_custom_call.1} parent=11 // pred_check
          %p273 = pneg %p96
        $region22: #{tpu_custom_call.1} parent=11 // pred_check_branch
          %275 = sbr.rel (%p273) target = $region24
        $region23: #{tpu_custom_call.1} parent=11 // pred_region
          _
        $region24: #{tpu_custom_call.1} parent=11 // pred_fallthru
          _
        // Predicated region
        $region25: #{tpu_custom_call.1} parent=11 // pred_check
          %p276 = pneg %p117
        $region26: #{tpu_custom_call.1} parent=11 // pred_check_branch
          %278 = sbr.rel (%p276) target = $region28
        $region27: #{tpu_custom_call.1} parent=11 // pred_region
          _
        $region28: #{tpu_custom_call.1} parent=11 // pred_fallthru
          _
        // Predicated region
        $region29: #{tpu_custom_call.1} parent=11 // pred_check
          %p279 = pneg %p138
        $region30: #{tpu_custom_call.1} parent=11 // pred_check_branch
          %281 = sbr.rel (%p279) target = $region32
        $region31: #{tpu_custom_call.1} parent=11 // pred_region
          _
        $region32: #{tpu_custom_call.1} parent=11 // pred_fallthru
          _
        // Predicated region
        $region33: #{tpu_custom_call.1} parent=11 // pred_check
          %p282 = pneg %p159
        $region34: #{tpu_custom_call.1} parent=11 // pred_check_branch
          %284 = sbr.rel (%p282) target = $region36
        $region35: #{tpu_custom_call.1} parent=11 // pred_region
          _
        $region36: #{tpu_custom_call.1} parent=11 // pred_fallthru
          _
        // Predicated region
        $region37: #{tpu_custom_call.1} parent=11 // pred_check
          %p285 = pneg %p180
        $region38: #{tpu_custom_call.1} parent=11 // pred_check_branch
          %287 = sbr.rel (%p285) target = $region40
        $region39: #{tpu_custom_call.1} parent=11 // pred_region
          _
        $region40: #{tpu_custom_call.1} parent=11 // pred_fallthru
          _
        // Predicated region
        $region41: #{tpu_custom_call.1} parent=11 // pred_check
          %p288 = pneg %p201
        $region42: #{tpu_custom_call.1} parent=11 // pred_check_branch
          %290 = sbr.rel (%p288) target = $region44
        $region43: #{tpu_custom_call.1} parent=11 // pred_region
          _
        $region44: #{tpu_custom_call.1} parent=11 // pred_fallthru
          _
        // Predicated region
        $region45: #{tpu_custom_call.1} parent=11 // pred_check
          %p291 = pneg %p222
        $region46: #{tpu_custom_call.1} parent=11 // pred_check_branch
          %293 = sbr.rel (%p291) target = $region48
        $region47: #{tpu_custom_call.1} parent=11 // pred_region
          _
        $region48: #{tpu_custom_call.1} parent=11 // pred_fallthru
          _
      $region12: #{tpu_custom_call.1} parent=5 // pred_fallthru
        _
      %p294 = scmp.lt.s32.totalorder %s16, 3
      // Predicated region
      $region49: #{tpu_custom_call.1} parent=5 // pred_check
        %p295 = pneg %p294
      $region50: #{tpu_custom_call.1} parent=5 // pred_check_branch
        %297 = sbr.rel (%p295) target = $region52
      $region51: #{tpu_custom_call.1} parent=5 // pred_region
        _
      $region52: #{tpu_custom_call.1} parent=5 // pred_fallthru
        _
      %p298 = scmp.le.s32.totalorder 1, %s16
      %p299 = scmp.lt.s32.totalorder %s16, 4
      %p300 = pnand %p298, %p299
      %p301 = pneg %p300
      // Predicated region
      $region53: #{tpu_custom_call.1} parent=5 // pred_check
        _
      $region54: #{tpu_custom_call.1} parent=5 // pred_check_branch
        %303 = sbr.rel (%p300) target = $region56
      $region55: #{tpu_custom_call.1} parent=5 // pred_region
        %s304 = ssub.s32 %s16, 1
        %p305 = scmp.lt.s32.totalorder %s26, 0
        %s306 = scalar_select %p305, %s26, 0
        %s307 = smul.addr %s306, 8
        %s308 = scalar_lea.vmem %s0, %s307
        %p309 = pneg %p54
        %p310 = pneg %p51
        %p311 = pneg %p75
        %p312 = pneg %p72
        %p313 = pneg %p96
        %p314 = pneg %p93
        %p315 = pneg %p117
        %p316 = pneg %p114
        %p317 = pneg %p138
        %p318 = pneg %p135
        %p319 = pneg %p159
        %p320 = pneg %p156
        %p321 = pneg %p180
        %p322 = pneg %p177
        %p323 = pneg %p201
        %p324 = pneg %p198
        %p325 = pneg %p222
        %p326 = pneg %p219
        %p327 = pneg %p248
        %p328 = pneg %p245
        %p329 = scmp.lt.s32.totalorder %s26, 0
        %s330 = scalar_select %p329, %s26, 0
        %s331 = smul.addr %s330, 8
        %s332 = scalar_lea.vmem %s0, %s331
        %p333 = scmp.eq.s32.totalorder %s25, 0
        %p334 = scmp.eq.s32.totalorder %s26, 0
        %p335 = pnand %p333, %p334
        %p336 = pneg %p335
        // Predicated region
        $region57: #{tpu_custom_call.1} parent=55 // pred_check
          _
        $region58: #{tpu_custom_call.1} parent=55 // pred_check_branch
          %338 = sbr.rel (%p335) target = $region60
        $region59: #{tpu_custom_call.1} parent=55 // pred_region
          %339 = vst [vmem:[#allocation2] sm:$0xf] 0.0
          %vm340 = vcmask 257024
          %341 = vst.msk [vmem:[#allocation3] sm:$0xf] %vm340, 0.0
        $region60: #{tpu_custom_call.1} parent=55 // pred_fallthru
          _
        %v342 = vld [vmem:[%s332] sm:$0xff]
        %v343 = vld [vmem:[%s1] sm:$0xff]
        %v344 = vld [vmem:[%s1 + $0x8] sm:$0xff]
        %v345 = vld [vmem:[%s1 + $0x10] sm:$0xff]
        %v346 = vld [vmem:[%s1 + $0x18] sm:$0xff]
        %v347 = vld [vmem:[%s1 + $0x20] sm:$0xff]
        %v348 = vld [vmem:[%s1 + $0x28] sm:$0xff]
        %v349 = vld [vmem:[%s1 + $0x30] sm:$0xff]
        %v350 = vld [vmem:[%s1 + $0x38] sm:$0xff]
        %v351 = vld [vmem:[%s1 + $0x40] sm:$0xff]
        %v352 = vld [vmem:[%s1 + $0x48] sm:$0xff]
        %v353 = vld [vmem:[%s1 + $0x50] sm:$0xff]
        %v354 = vld [vmem:[%s1 + $0x58] sm:$0xff]
        %v355 = vld [vmem:[%s1 + $0x60] sm:$0xff]
        %v356 = vld [vmem:[%s1 + $0x68] sm:$0xff]
        %v357 = vld [vmem:[%s1 + $0x70] sm:$0xff]
        %v358 = vld [vmem:[%s1 + $0x78] sm:$0xff]
        %359 = vmatprep.subr.mxu0 0.0
        %360 = vmatpush1.msra.mxu0 %v343
        %361 = vmatprep.subr.mxu0 0.0
        %362 = vmatpush1.msra.mxu0 %v344
        %363 = vmatprep.subr.mxu0 0.0
        %364 = vmatpush1.msra.mxu0 %v345
        %365 = vmatprep.subr.mxu0 0.0
        %366 = vmatpush1.msra.mxu0 %v346
        %367 = vmatprep.subr.mxu0 0.0
        %368 = vmatpush1.msra.mxu0 %v347
        %369 = vmatprep.subr.mxu0 0.0
        %370 = vmatpush1.msra.mxu0 %v348
        %371 = vmatprep.subr.mxu0 0.0
        %372 = vmatpush1.msra.mxu0 %v349
        %373 = vmatprep.subr.mxu0 0.0
        %374 = vmatpush1.msra.mxu0 %v350
        %375 = vmatprep.subr.mxu0 0.0
        %376 = vmatpush1.msra.mxu0 %v351
        %377 = vmatprep.subr.mxu0 0.0
        %378 = vmatpush1.msra.mxu0 %v352
        %379 = vmatprep.subr.mxu0 0.0
        %380 = vmatpush1.msra.mxu0 %v353
        %381 = vmatprep.subr.mxu0 0.0
        %382 = vmatpush1.msra.mxu0 %v354
        %383 = vmatprep.subr.mxu0 0.0
        %384 = vmatpush1.msra.mxu0 %v355
        %385 = vmatprep.subr.mxu0 0.0
        %386 = vmatpush1.msra.mxu0 %v356
        %387 = vmatprep.subr.mxu0 0.0
        %388 = vmatpush1.msra.mxu0 %v357
        %389 = vmatprep.subr.mxu0 0.0
        %390 = vmatpush1.msra.mxu0 %v358
        %391 = vmatprep.subr.mxu0 0.0
        %392 = vmatpush1.msra.mxu0 0.0
        %393 = vmatprep.subr.mxu0 0.0
        %394 = vmatpush1.msra.mxu0 0.0
        %395 = vmatprep.subr.mxu0 0.0
        %396 = vmatpush1.msra.mxu0 0.0
        %397 = vmatprep.subr.mxu0 0.0
        %398 = vmatpush1.msra.mxu0 0.0
        %399 = vmatprep.subr.mxu0 0.0
        %400 = vmatpush1.msra.mxu0 0.0
        %401 = vmatprep.subr.mxu0 0.0
        %402 = vmatpush1.msra.mxu0 0.0
        %403 = vmatprep.subr.mxu0 0.0
        %404 = vmatpush1.msra.mxu0 0.0
        %405 = vmatprep.subr.mxu0 0.0
        %406 = vmatpush1.msra.mxu0 0.0
        %407 = vmatprep.subr.mxu0 0.0
        %408 = vmatpush1.msra.mxu0 0.0
        %409 = vmatprep.subr.mxu0 0.0
        %410 = vmatpush1.msra.mxu0 0.0
        %411 = vmatprep.subr.mxu0 0.0
        %412 = vmatpush1.msra.mxu0 0.0
        %413 = vmatprep.subr.mxu0 0.0
        %414 = vmatpush1.msra.mxu0 0.0
        %415 = vmatprep.subr.mxu0 0.0
        %416 = vmatpush1.msra.mxu0 0.0
        %417 = vmatprep.subr.mxu0 0.0
        %418 = vmatpush1.msra.mxu0 0.0
        %419 = vmatprep.subr.mxu0 0.0
        %420 = vmatpush1.msra.mxu0 0.0
        %421 = vmatprep.subr.mxu0 0.0
        %422 = vmatpush1.msra.mxu0 0.0
        %423 = vmatprep.mubr.f32.mxu0 0.0
        %424 = vmatmul.mubr.f32.gmra.mrb[0].mxu0 %v342
        %v425 = vpop.f32.mrb[0].mxu0
        %v426 = vadd.f32 0.0, %v425
        %v427 = vpop.f32.mrb[0].mxu0
        %428 = vdwg.mxu0
        // Predicated region
        $region61: #{tpu_custom_call.1} parent=55 // pred_check
          %p429 = pneg %p333
        $region62: #{tpu_custom_call.1} parent=55 // pred_check_branch
          %431 = sbr.rel (%p429) target = $region64
        $region63: #{tpu_custom_call.1} parent=55 // pred_region
          %v432 = vld [vmem:[#allocation2] sm:$0x1]
          %v433 = vrot.slane %v426, 4
          %v434 = vadd.f32 %v426, %v433
          %v435 = vrot.slane %v434, 2
          %v436 = vadd.f32 %v434, %v435
          %v437 = vrot.slane %v436, 1
          %v438 = vadd.f32 %v436, %v437
          %v439 = vadd.f32 %v432, %v438
          %440 = vst [vmem:[#allocation2] sm:$0x1] %v439
          %v441 = vld [vmem:[#allocation2 + $0x1] sm:$0x1]
          %v442 = vmul.f32 %v426, %v426
          %v443 = vrot.slane %v442, 4
          %v444 = vadd.f32 %v442, %v443
          %v445 = vrot.slane %v444, 2
          %v446 = vadd.f32 %v444, %v445
          %v447 = vrot.slane %v446, 1
          %v448 = vadd.f32 %v446, %v447
          %v449 = vadd.f32 %v441, %v448
          %450 = vst [vmem:[#allocation2 + $0x1] sm:$0x1] %v449
          %vm451 = vcmask 64512
          %452 = vst.msk [vmem:[#allocation4] sm:$0xff] %vm451, 0.0
        $region64: #{tpu_custom_call.1} parent=55 // pred_fallthru
          _
        %p453 = scmp.eq.s32.totalorder %s25, 1
        %p454 = pnand %p453, %p334
        %p455 = pneg %p454
        // Predicated region
        $region65: #{tpu_custom_call.1} parent=55 // pred_check
          _
        $region66: #{tpu_custom_call.1} parent=55 // pred_check_branch
          %457 = sbr.rel (%p454) target = $region68
        $region67: #{tpu_custom_call.1} parent=55 // pred_region
          %v458 = vld [vmem:[#allocation2] sm:$0x1]
          %v459 = vmul.f32 %v458, 0.5
          %v460 = vld [vmem:[#allocation2 + $0x1] sm:$0x1]
          %v461 = vmul.f32 %v460, 0.5
          %v462 = vmul.f32 %v459, %v459
          %v463 = vsub.f32 %v461, %v462
          %v464 = vmax.f32 %v463, 0.0
          %v465 = vld [vmem:[%s3] sm:$0x1]
          %v466 = vadd.f32 %v464, 1e-05
          %v467 = vrsqrt.pop %v466
          %v468 = vmul.f32 %v465, %v467
          %469 = vst [vmem:[#allocation2 + $0x2] sm:$0x1] %v468
          %v470 = vld [vmem:[%s4] sm:$0x1]
          %v471 = vmul.f32 %v459, %v468
          %v472 = vsub.f32 %v470, %v471
          %473 = vst [vmem:[#allocation2 + $0x3] sm:$0x1] %v472
        $region68: #{tpu_custom_call.1} parent=55 // pred_fallthru
          _
        %p474 = scmp.ge.s32.totalorder %s25, 1
        // Predicated region
        $region69: #{tpu_custom_call.1} parent=55 // pred_check
          %p475 = pneg %p474
        $region70: #{tpu_custom_call.1} parent=55 // pred_check_branch
          %477 = sbr.rel (%p475) target = $region72
        $region71: #{tpu_custom_call.1} parent=55 // pred_region
          %v478 = vld [vmem:[#allocation2 + $0x2] sm:$0x1]
          %v479 = vlaneseq
          %v480 = vshrl.u32 %v479, 7
          %v481 = vsub.s32 0, %v480
          %v482 = vrot.slane %v478, %v481
          %v483 = vmul.f32 %v426, %v482
          %v484 = vld [vmem:[#allocation2 + $0x3] sm:$0x1]
          %v485 = vlaneseq
          %v486 = vshrl.u32 %v485, 7
          %v487 = vsub.s32 0, %v486
          %v488 = vrot.slane %v484, %v487
          %v489 = vadd.f32 %v483, %v488
          %v490 = vmax.f32 %v489, 0.0
          %v491 = vld [vmem:[%s2] sm:$0xff]
          %v492 = vld [vmem:[%s2 + $0x8] sm:$0xff]
          %v493 = vld [vmem:[%s2 + $0x10] sm:$0xff]
          %v494 = vld [vmem:[%s2 + $0x18] sm:$0xff]
          %v495 = vld [vmem:[%s2 + $0x20] sm:$0xff]
          %v496 = vld [vmem:[%s2 + $0x28] sm:$0xff]
          %v497 = vld [vmem:[%s2 + $0x30] sm:$0xff]
          %v498 = vld [vmem:[%s2 + $0x38] sm:$0xff]
          %v499 = vld [vmem:[%s2 + $0x40] sm:$0xff]
          %v500 = vld [vmem:[%s2 + $0x48] sm:$0xff]
          %v501 = vld [vmem:[%s2 + $0x50] sm:$0xff]
          %v502 = vld [vmem:[%s2 + $0x58] sm:$0xff]
          %v503 = vld [vmem:[%s2 + $0x60] sm:$0xff]
          %v504 = vld [vmem:[%s2 + $0x68] sm:$0xff]
          %v505 = vld [vmem:[%s2 + $0x70] sm:$0xff]
          %v506 = vld [vmem:[%s2 + $0x78] sm:$0xff]
          %507 = vmatprep.subr.mxu0 0.0
          %508 = vmatpush1.msra.mxu0 %v491
          %509 = vmatprep.subr.mxu0 0.0
          %510 = vmatpush1.msra.mxu0 %v492
          %511 = vmatprep.subr.mxu0 0.0
          %512 = vmatpush1.msra.mxu0 %v493
          %513 = vmatprep.subr.mxu0 0.0
          %514 = vmatpush1.msra.mxu0 %v494
          %515 = vmatprep.subr.mxu0 0.0
          %516 = vmatpush1.msra.mxu0 %v495
          %517 = vmatprep.subr.mxu0 0.0
          %518 = vmatpush1.msra.mxu0 %v496
          %519 = vmatprep.subr.mxu0 0.0
          %520 = vmatpush1.msra.mxu0 %v497
          %521 = vmatprep.subr.mxu0 0.0
          %522 = vmatpush1.msra.mxu0 %v498
          %523 = vmatprep.subr.mxu0 0.0
          %524 = vmatpush1.msra.mxu0 %v499
          %525 = vmatprep.subr.mxu0 0.0
          %526 = vmatpush1.msra.mxu0 %v500
          %527 = vmatprep.subr.mxu0 0.0
          %528 = vmatpush1.msra.mxu0 %v501
          %529 = vmatprep.subr.mxu0 0.0
          %530 = vmatpush1.msra.mxu0 %v502
          %531 = vmatprep.subr.mxu0 0.0
          %532 = vmatpush1.msra.mxu0 %v503
          %533 = vmatprep.subr.mxu0 0.0
          %534 = vmatpush1.msra.mxu0 %v504
          %535 = vmatprep.subr.mxu0 0.0
          %536 = vmatpush1.msra.mxu0 %v505
          %537 = vmatprep.subr.mxu0 0.0
          %538 = vmatpush1.msra.mxu0 %v506
          %539 = vmatprep.subr.mxu0 0.0
          %540 = vmatpush1.msra.mxu0 0.0
          %541 = vmatprep.subr.mxu0 0.0
          %542 = vmatpush1.msra.mxu0 0.0
          %543 = vmatprep.subr.mxu0 0.0
          %544 = vmatpush1.msra.mxu0 0.0
          %545 = vmatprep.subr.mxu0 0.0
          %546 = vmatpush1.msra.mxu0 0.0
          %547 = vmatprep.subr.mxu0 0.0
          %548 = vmatpush1.msra.mxu0 0.0
          %549 = vmatprep.subr.mxu0 0.0
          %550 = vmatpush1.msra.mxu0 0.0
          %551 = vmatprep.subr.mxu0 0.0
          %552 = vmatpush1.msra.mxu0 0.0
          %553 = vmatprep.subr.mxu0 0.0
          %554 = vmatpush1.msra.mxu0 0.0
          %555 = vmatprep.subr.mxu0 0.0
          %556 = vmatpush1.msra.mxu0 0.0
          %557 = vmatprep.subr.mxu0 0.0
          %558 = vmatpush1.msra.mxu0 0.0
          %559 = vmatprep.subr.mxu0 0.0
          %560 = vmatpush1.msra.mxu0 0.0
          %561 = vmatprep.subr.mxu0 0.0
          %562 = vmatpush1.msra.mxu0 0.0
          %563 = vmatprep.subr.mxu0 0.0
          %564 = vmatpush1.msra.mxu0 0.0
          %565 = vmatprep.subr.mxu0 0.0
          %566 = vmatpush1.msra.mxu0 0.0
          %567 = vmatprep.subr.mxu0 0.0
          %568 = vmatpush1.msra.mxu0 0.0
          %569 = vmatprep.subr.mxu0 0.0
          %570 = vmatpush1.msra.mxu0 0.0
          %571 = vmatprep.mubr.f32.mxu0 0.0
          %572 = vmatmul.mubr.f32.gmra.mrb[0].mxu0 %v490
          %v573 = vpop.f32.mrb[0].mxu0
          %v574 = vadd.f32 0.0, %v573
          %v575 = vpop.f32.mrb[0].mxu0
          %576 = vdwg.mxu0
          // Predicated region
          $region73: #{tpu_custom_call.1} parent=71 // pred_check
            %p577 = pneg %p453
          $region74: #{tpu_custom_call.1} parent=71 // pred_check_branch
            %579 = sbr.rel (%p577) target = $region76
          $region75: #{tpu_custom_call.1} parent=71 // pred_region
            %s580 = smul.u32 %s26, 8
            %v581 = vlaneseq
            %v582 = vshrl.u32 %v581, 7
            %v583 = vstv %s580
            %v584 = vadd.s32 %v583, %v582
            %vm585 = vcmp.lt.s32.totalorder %v584, 2
            %v586 = vsel %vm585, 1, 0
            %v587 = vcvt.s32.f32 %v586
            %v588 = vmul.f32 %v574, %v587
            %v589 = vld [vmem:[#allocation3] sm:$0x1]
            %vm590 = vcmask 261120
            %v591 = vsel %vm590, %v588, 0.0
            %v592 = vrot.slane %v591, 4
            %v593 = vadd.f32 %v591, %v592
            %v594 = vrot.slane %v593, 2
            %v595 = vadd.f32 %v593, %v594
            %v596 = vrot.slane %v595, 1
            %v597 = vadd.f32 %v595, %v596
            %v598 = vadd.f32 %v589, %v597
            %vm599 = vcmask 253952
            %600 = vst.msk [vmem:[#allocation3] sm:$0x1] %vm599, %v598
            %v601 = vld [vmem:[#allocation3 + $0x1] sm:$0x1]
            %v602 = vmul.f32 %v588, %v588
            %v603 = vsel %vm590, %v602, 0.0
            %v604 = vrot.slane %v603, 4
            %v605 = vadd.f32 %v603, %v604
            %v606 = vrot.slane %v605, 2
            %v607 = vadd.f32 %v605, %v606
            %v608 = vrot.slane %v607, 1
            %v609 = vadd.f32 %v607, %v608
            %v610 = vadd.f32 %v601, %v609
            %611 = vst.msk [vmem:[#allocation3 + $0x1] sm:$0x1] %vm599, %v610
            %vm612 = vcmask 64512
            %613 = vst.msk [vmem:[#allocation4] sm:$0xff] %vm612, 0.0
          $region76: #{tpu_custom_call.1} parent=71 // pred_fallthru
            _
          %p614 = scmp.eq.s32.totalorder %s25, 2
          %p615 = pnand %p614, %p334
          %p616 = pneg %p615
          // Predicated region
          $region77: #{tpu_custom_call.1} parent=71 // pred_check
            _
          $region78: #{tpu_custom_call.1} parent=71 // pred_check_branch
            %618 = sbr.rel (%p615) target = $region80
          $region79: #{tpu_custom_call.1} parent=71 // pred_region
            %v619 = vld [vmem:[#allocation3] sm:$0x1]
            %v620 = vmul.f32 %v619, 0.5
            %v621 = vld [vmem:[#allocation3 + $0x1] sm:$0x1]
            %v622 = vmul.f32 %v621, 0.5
            %v623 = vmul.f32 %v620, %v620
            %v624 = vsub.f32 %v622, %v623
            %v625 = vmax.f32 %v624, 0.0
            %v626 = vld [vmem:[%s5] sm:$0x1]
            %v627 = vadd.f32 %v625, 1e-05
            %v628 = vrsqrt.pop %v627
            %v629 = vmul.f32 %v626, %v628
            %vm630 = vcmask 253952
            %631 = vst.msk [vmem:[#allocation3 + $0x2] sm:$0x1] %vm630, %v629
            %v632 = vld [vmem:[%s6] sm:$0x1]
            %v633 = vmul.f32 %v620, %v629
            %v634 = vsub.f32 %v632, %v633
            %635 = vst.msk [vmem:[#allocation3 + $0x3] sm:$0x1] %vm630, %v634
          $region80: #{tpu_custom_call.1} parent=71 // pred_fallthru
            _
          // Predicated region
          $region81: #{tpu_custom_call.1} parent=71 // pred_check
            %p636 = pneg %p614
          $region82: #{tpu_custom_call.1} parent=71 // pred_check_branch
            %638 = sbr.rel (%p636) target = $region84
          $region83: #{tpu_custom_call.1} parent=71 // pred_region
            %v639 = vld [vmem:[#allocation3 + $0x2] sm:$0x1]
            %v640 = vlaneseq
            %v641 = vshrl.u32 %v640, 7
            %v642 = vsub.s32 0, %v641
            %v643 = vrot.slane %v639, %v642
            %v644 = vmul.f32 %v574, %v643
            %v645 = vld [vmem:[#allocation3 + $0x3] sm:$0x1]
            %v646 = vlaneseq
            %v647 = vshrl.u32 %v646, 7
            %v648 = vsub.s32 0, %v647
            %v649 = vrot.slane %v645, %v648
            %v650 = vadd.f32 %v644, %v649
            %v651 = vmax.f32 %v650, 0.0
            %v652 = vld [vmem:[%s7] sm:$0xff]
            %v653 = vld [vmem:[%s7 + $0x8] sm:$0xff]
            %v654 = vld [vmem:[%s7 + $0x10] sm:$0xff]
            %v655 = vld [vmem:[%s7 + $0x18] sm:$0xff]
            %v656 = vld [vmem:[%s8] sm:$0x1]
            %v658 = vlaneseq
            %v659 = vshrl.u32 %v658, 7
            %v660 = vsub.s32 0, %v659
            %v661 = vrot.slane %v656, %v660
            %vm663 = vcmask 261120
            %v665 = vsel %vm663, %v651, 0
            %667 = vmatprep.subr.mxu0 0.0
            %668 = vmatpush1.msra.mxu0 %v652
            %669 = vmatprep.subr.mxu0 0.0
            %670 = vmatpush1.msra.mxu0 %v653
            %671 = vmatprep.subr.mxu0 0.0
            %672 = vmatpush1.msra.mxu0 %v654
            %673 = vmatprep.subr.mxu0 0.0
            %674 = vmatpush1.msra.mxu0 %v655
            %675 = vmatprep.subr.mxu0 0.0
            %676 = vmatpush1.msra.mxu0 0.0
            %677 = vmatprep.subr.mxu0 0.0
            %678 = vmatpush1.msra.mxu0 0.0
            %679 = vmatprep.subr.mxu0 0.0
            %680 = vmatpush1.msra.mxu0 0.0
            %681 = vmatprep.subr.mxu0 0.0
            %682 = vmatpush1.msra.mxu0 0.0
            %683 = vmatprep.subr.mxu0 0.0
            %684 = vmatpush1.msra.mxu0 0.0
            %685 = vmatprep.subr.mxu0 0.0
            %686 = vmatpush1.msra.mxu0 0.0
            %687 = vmatprep.subr.mxu0 0.0
            %688 = vmatpush1.msra.mxu0 0.0
            %689 = vmatprep.subr.mxu0 0.0
            %690 = vmatpush1.msra.mxu0 0.0
            %691 = vmatprep.subr.mxu0 0.0
            %692 = vmatpush1.msra.mxu0 0.0
            %693 = vmatprep.subr.mxu0 0.0
            %694 = vmatpush1.msra.mxu0 0.0
            %695 = vmatprep.subr.mxu0 0.0
            %696 = vmatpush1.msra.mxu0 0.0
            %697 = vmatprep.subr.mxu0 0.0
            %698 = vmatpush1.msra.mxu0 0.0
            %699 = vmatprep.subr.mxu0 0.0
            %700 = vmatpush1.msra.mxu0 0.0
            %701 = vmatprep.subr.mxu0 0.0
            %702 = vmatpush1.msra.mxu0 0.0
            %703 = vmatprep.subr.mxu0 0.0
            %704 = vmatpush1.msra.mxu0 0.0
            %705 = vmatprep.subr.mxu0 0.0
            %706 = vmatpush1.msra.mxu0 0.0
            %707 = vmatprep.subr.mxu0 0.0
            %708 = vmatpush1.msra.mxu0 0.0
            %709 = vmatprep.subr.mxu0 0.0
            %710 = vmatpush1.msra.mxu0 0.0
            %711 = vmatprep.subr.mxu0 0.0
            %712 = vmatpush1.msra.mxu0 0.0
            %713 = vmatprep.subr.mxu0 0.0
            %714 = vmatpush1.msra.mxu0 0.0
            %715 = vmatprep.subr.mxu0 0.0
            %716 = vmatpush1.msra.mxu0 0.0
            %717 = vmatprep.subr.mxu0 0.0
            %718 = vmatpush1.msra.mxu0 0.0
            %719 = vmatprep.subr.mxu0 0.0
            %720 = vmatpush1.msra.mxu0 0.0
            %721 = vmatprep.subr.mxu0 0.0
            %722 = vmatpush1.msra.mxu0 0.0
            %723 = vmatprep.subr.mxu0 0.0
            %724 = vmatpush1.msra.mxu0 0.0
            %725 = vmatprep.subr.mxu0 0.0
            %726 = vmatpush1.msra.mxu0 0.0
            %727 = vmatprep.subr.mxu0 0.0
            %728 = vmatpush1.msra.mxu0 0.0
            %729 = vmatprep.subr.mxu0 0.0
            %730 = vmatpush1.msra.mxu0 0.0
            %731 = vmatprep.mubr.f32.mxu0 0.0
            %732 = vmatmul.mubr.f32.gmra.mrb[0].mxu0 %v665
            %v733 = vpop.f32.mrb[0].mxu0
            %v734 = vadd.f32 %v661, %v733
            %v735 = vpop.f32.mrb[0].mxu0
            %736 = vdwg.mxu0
            %v737 = vlaneseq
            %v738 = vand.u32 %v737, 127
            %vm739 = vcmp.lt.s32.totalorder %v738, 7
            %v740 = vsel %vm739, %v734, -inf
            %vm741 = vcmask 64512
            %v742 = vsel %vm741, %v740, -inf
            %743 = vmax.xlane.f32.xlu0 %v742
            %v744 = vpop.xlane.xlu0 %743
            %v745 = vsub.f32 %v734, %v744
            %v746 = vmul.f32 %v745, 1.442695
            %v747 = vpow.pop %v746
            %v748 = vsel %vm739, %v747, 0.0
            %v749 = vsel %vm741, %v748, 0.0
            %750 = vadd.xlane.f32.xlu0 %v749
            %v751 = vpop.xlane.xlu0 %750
            %v752 = vrcp.pop %v751
            %v753 = vmul.f32 %v748, %v752
            %v754 = vsel %vm739, %v753, %v734
            %755 = vst.msk [vmem:[#allocation4] sm:$0xff] %vm741, %v754
          $region84: #{tpu_custom_call.1} parent=71 // pred_fallthru
            _
        $region72: #{tpu_custom_call.1} parent=55 // pred_fallthru
          _
        // Predicated region
        $region85: #{tpu_custom_call.1} parent=55 // pred_check
          %p756 = pneg %p245
        $region86: #{tpu_custom_call.1} parent=55 // pred_check_branch
          %758 = sbr.rel (%p756) target = $region88
        $region87: #{tpu_custom_call.1} parent=55 // pred_region
          %s760 = ssub.s32 128, 128
          %761 = vsyncadd [#allocation5], %s760
          %s762 = smul.addr %s26, 128
          %s763 = scalar_lea.hbm %s9, %s762
          %s765 = sshll.u32 [#allocation4], 4
          %s766 = int_to_ptr.vmem [resolvable:$true] %s765
          %768 = dma.vmem_to_hbm [thread:$0]  %s766, 128, %s763, [#allocation5]
        $region88: #{tpu_custom_call.1} parent=55 // pred_fallthru
          _
        // Predicated region
        $region89: #{tpu_custom_call.1} parent=55 // pred_check
          %p769 = pneg %p245
        $region90: #{tpu_custom_call.1} parent=55 // pred_check_branch
          %771 = sbr.rel (%p769) target = $region92
        $region91: #{tpu_custom_call.1} parent=55 // pred_region
          %772 = dma.done [#allocation5], 128
        $region92: #{tpu_custom_call.1} parent=55 // pred_fallthru
          _
      $region56: #{tpu_custom_call.1} parent=5 // pred_fallthru
        _
      %p773 = scmp.le.s32.totalorder 2, %s16
      // Predicated region
      $region93: #{tpu_custom_call.1} parent=5 // pred_check
        %p774 = pneg %p773
      $region94: #{tpu_custom_call.1} parent=5 // pred_check_branch
        %776 = sbr.rel (%p774) target = $region96
      $region95: #{tpu_custom_call.1} parent=5 // pred_region
        %s777 = ssub.s32 %s16, 2
      $region96: #{tpu_custom_call.1} parent=5 // pred_fallthru
        _
    $region6: #{tpu_custom_call.1} parent=1 // loop_footer
      %s20 = sadd.s32 1, %s16
    $region7: #{tpu_custom_call.1} parent=1 // loop_footer_branch
      %15 = sbr.rel target = $region3
    $region8: #{tpu_custom_call.1} parent=1 // loop_exit
      _
    %778 = vsyncpa [#allocation5], 1
    %s779 = scalar_lea.sflag [#allocation5], 1
    %780 = vsyncpa %s779, 1

</llo_original>
